<compile_context>
chip_gen: v7x
topology: tpu7x:2x2x1
jax: 0.10.0
libtpu: 0.0.40
codegen_flags: <defaults>
</compile_context>

<pallas_src>
import jax
import jax.numpy as jnp
from jax.experimental import pallas as pl
from jax.experimental.pallas import tpu as pltpu


def _make_attention_kernel(valid_len):
    """Builds the kernel body; `valid_len` is the true (unpadded) seq length."""

    def kernel(x_ref, w1_ref, b1_ref, w2_ref, xout_ref, alpha_ref):
        # x_ref:     (TB, Lp, D)  batch tile of x
        # w1_ref:    (D, C)       pre-transposed so u = x @ w1 + b1
        # b1_ref:    (1, C)
        # w2_ref:    (1, C)       context vector as a row
        # xout_ref:  (TB, D)
        # alpha_ref: (TB, Lp)     lane-dense; wrapper reshapes to (B, L, 1)
        tb, Lp, D = x_ref.shape
        C = w1_ref.shape[1]

        x = x_ref[...]                                    # (TB, Lp, D)
        x2 = x.reshape(tb * Lp, D)                        # free relabel (Lp % 8 == 0)

        # Linear(D -> C) + tanh: one big MXU matmul over all TB*Lp rows (fills
        # the MXU, amortizes per-step overhead), tanh on the EUP.
        u = jnp.dot(x2, w1_ref[...], preferred_element_type=jnp.float32)
        u = jnp.tanh(u + b1_ref[...])                     # (TB*Lp, C), f32
        u3 = u.reshape(tb, Lp, C)

        # Linear(C -> 1, no bias) as a VPU multiply + lane reduction: avoids a
        # 1-lane MXU matmul and leaves scores lane-dense as (TB, Lp).
        scores = jnp.sum(u3 * w2_ref[...], axis=-1)       # (TB, Lp), f32

        if valid_len != Lp:  # static branch: only emitted if the seq axis was padded
            seq = jax.lax.broadcasted_iota(jnp.int32, (tb, Lp), 1)
            scores = jnp.where(seq < valid_len, scores, jnp.float32(-1e30))

        # Numerically stable softmax over the sequence (lane) axis, per row.
        m = jnp.max(scores, axis=1, keepdims=True)        # (TB, 1)
        e = jnp.exp(scores - m)                           # (TB, Lp), unnormalized
        denom = jnp.sum(e, axis=1, keepdims=True)         # (TB, 1)

        # Exact divide (NOT approx reciprocal) for parity with the reference.
        alpha_ref[...] = (e / denom).astype(alpha_ref.dtype)

        # Weighted sum over the sequence with the UN-normalized weights; the
        # tiny (TB, D) result is normalized afterwards so the divide never
        # touches the (TB, Lp, D) broadcast. (e is f32 so the accumulation is
        # f32 regardless of x's dtype.)
        acc = jnp.sum(x * e[:, :, None], axis=1)          # (TB, D), f32
        xout_ref[...] = (acc / denom).astype(xout_ref.dtype)

    return kernel


def attention_forward(x, w1, b1, w2, *, target_rows=256,
                      max_tile_bytes=8 << 20, vmem_limit_bytes=48 << 20):
    """x: (B, L, D); w1: (D, C) (= torch weight.T); b1: (C,); w2: (C, 1).

    Returns (x_out (B, D), alpha (B, L, 1)), matching the PyTorch module.
    """
    B, L, D = x.shape
    C = w1.shape[1]

    # Pad the sequence axis to a multiple of 8 ONLY if needed, so the in-kernel
    # reshapes are pure sublane relabelings (padded positions are masked to
    # -inf-like scores inside the kernel and sliced off below).
    Lp = pl.cdiv(L, 8) * 8
    x_in = jnp.pad(x, ((0, 0), (0, Lp - L), (0, 0))) if Lp != L else x

    # ---- batch tile TB ----
    # Enough rows (TB*Lp) per grid step to fill the MXU and amortize the
    # ~0.35us fixed per-step cost, but capped so the double-buffered x tile
    # plus the in-kernel f32 temps stay well inside the VMEM budget
    # (v7x: 64 MiB total; budget ~= 3-4x the x tile + weights < 48 MiB).
    bytes_per_batch = max(1, Lp * D * x.dtype.itemsize)
    tb = max(1, pl.cdiv(target_rows, Lp))
    tb = min(tb, max(1, max_tile_bytes // bytes_per_batch))
    tb = min(tb, B)
    if tb < B and tb > 8:
        tb = (tb // 8) * 8  # sublane-align the (TB, *) output blocks
    grid = pl.cdiv(B, tb)   # ragged last block is handled by Pallas: no batch pad,
                            # out-of-range rows are never written back.

    b1_row = b1.reshape(1, C)
    w2_row = w2.reshape(1, C)   # (C, 1) -> row layout for the VPU reduction

    out_shapes = (
        jax.ShapeDtypeStruct((B, D), x.dtype),
        jax.ShapeDtypeStruct((B, Lp), x.dtype),   # lane-dense alpha slab
    )

    grid_spec = pltpu.PrefetchScalarGridSpec(
        num_scalar_prefetch=0,
        grid=(grid,),
        in_specs=[
            pl.BlockSpec((tb, Lp, D), lambda i: (i, 0, 0)),   # batch tile of x
            pl.BlockSpec((D, C), lambda i: (0, 0)),           # W1 (VMEM-resident)
            pl.BlockSpec((1, C), lambda i: (0, 0)),           # b1 row
            pl.BlockSpec((1, C), lambda i: (0, 0)),           # W2 row
        ],
        out_specs=[
            pl.BlockSpec((tb, D), lambda i: (i, 0)),          # x_out rows
            pl.BlockSpec((tb, Lp), lambda i: (i, 0)),         # alpha rows (seq on lanes)
        ],
    )

    x_out, alpha = pl.pallas_call(
        _make_attention_kernel(L),
        out_shape=out_shapes,
        grid_spec=grid_spec,
        compiler_params=pltpu.CompilerParams(
            dimension_semantics=("parallel",),
            vmem_limit_bytes=vmem_limit_bytes,
        ),
    )(x_in, w1, b1_row, w2_row)

    alpha = (alpha[:, :L] if Lp != L else alpha).reshape(B, L, 1)
    return x_out, alpha


def reference_forward(x, w1, b1, w2):
    """Pure-JAX reference mirroring the PyTorch forward exactly."""
    B, L, D = x.shape
    hp = jax.lax.Precision.HIGHEST   # match the kernel's f32 MXU path on HW
    u = jnp.tanh(jnp.dot(x.reshape(B * L, D), w1, precision=hp) + b1)   # (B*L, C)
    uv = jnp.dot(u, w2, precision=hp).reshape(B, L)                     # (B, L)
    m = jnp.max(uv, axis=1, keepdims=True)
    e = jnp.exp(uv - m)
    alpha = (e / jnp.sum(e, axis=1, keepdims=True))[..., None]          # (B, L, 1)
    x_out = jnp.sum(x * alpha, axis=1)                                  # (B, D)
    return x_out, alpha


if __name__ == "__main__":
    # Small shapes consistent with the module: batch=2, seq=8, input_dim=32, context=32
    B, L, D, C = 2, 8, 32, 32

    key = jax.random.PRNGKey(0)
    k_x, k_w1, k_b1, k_w2 = jax.random.split(key, 4)

    x = jax.random.normal(k_x, (B, L, D), dtype=jnp.float32)

    # Deterministic parameter init (PyTorch-Linear-like uniform fan-in scaling).
    bound1 = 1.0 / (D ** 0.5)
    w1 = jax.random.uniform(k_w1, (D, C), minval=-bound1, maxval=bound1, dtype=jnp.float32)
    b1 = jax.random.uniform(k_b1, (C,), minval=-bound1, maxval=bound1, dtype=jnp.float32)
    bound2 = 1.0 / (C ** 0.5)
    w2 = jax.random.uniform(k_w2, (C, 1), minval=-bound2, maxval=bound2, dtype=jnp.float32)

    x_out, alpha = attention_forward(x, w1, b1, w2)
    jax.block_until_ready((x_out, alpha))

    # Correctness check against the pure-JAX reference of the PyTorch forward.
    x_out_ref, alpha_ref = reference_forward(x, w1, b1, w2)
    assert x_out.shape == (B, D)
    assert alpha.shape == (B, L, 1)
    assert jnp.allclose(x_out, x_out_ref, atol=3e-5, rtol=3e-4), \
        float(jnp.max(jnp.abs(x_out - x_out_ref)))
    assert jnp.allclose(alpha, alpha_ref, atol=3e-5, rtol=3e-4), \
        float(jnp.max(jnp.abs(alpha - alpha_ref)))

    print("KERNEL_OK")
</pallas_src>

<mosaic_0001>
module attributes {stable_mosaic.version = 11 : i64} {
  func.func @kernel(%arg0: i32, %arg1: memref<2x8x32xf32, #tpu.memory_space<vmem>>, %arg2: memref<32x32xf32, #tpu.memory_space<vmem>>, %arg3: memref<1x32xf32, #tpu.memory_space<vmem>>, %arg4: memref<1x32xf32, #tpu.memory_space<vmem>>, %arg5: memref<2x32xf32, #tpu.memory_space<vmem>>, %arg6: memref<2x8xf32, #tpu.memory_space<vmem>>) attributes {dimension_semantics = [#tpu.dimension_semantics<parallel>], iteration_bounds = array<i64: 1>, scalar_prefetch = 0 : i64, scratch_operands = 0 : i64, tpu.core_type = #tpu.core_type<tc>, window_params = [{transform_indices = @transform_0, window_bounds = array<i64: 2, 8, 32>}, {pipeline_mode = #tpu.pipeline_mode<synchronous>, transform_indices = @transform_1, window_bounds = array<i64: 32, 32>}, {pipeline_mode = #tpu.pipeline_mode<synchronous>, transform_indices = @transform_2, window_bounds = array<i64: 1, 32>}, {pipeline_mode = #tpu.pipeline_mode<synchronous>, transform_indices = @transform_3, window_bounds = array<i64: 1, 32>}, {transform_indices = @transform_4, window_bounds = array<i64: 2, 32>}, {transform_indices = @transform_5, window_bounds = array<i64: 2, 8>}]} {
    %c0 = arith.constant 0 : index
    %c0_0 = arith.constant 0 : index
    %c0_1 = arith.constant 0 : index
    %0 = vector.load %arg1[%c0, %c0_0, %c0_1] : memref<2x8x32xf32, #tpu.memory_space<vmem>>, vector<2x8x32xf32>
    %1 = vector.shape_cast %0 : vector<2x8x32xf32> to vector<16x32xf32>
    %c0_2 = arith.constant 0 : index
    %c0_3 = arith.constant 0 : index
    %2 = vector.load %arg2[%c0_2, %c0_3] : memref<32x32xf32, #tpu.memory_space<vmem>>, vector<32x32xf32>
    %cst = arith.constant dense<0.000000e+00> : vector<16x32xf32>
    %3 = tpu.matmul %1, %2, %cst {dimension_numbers = #tpu.dot_dimension_numbers<[1], [0], [0], [1], [0, 0, 1, 1], [], []>} : vector<16x32xf32>, vector<32x32xf32>, vector<16x32xf32> -> vector<16x32xf32>
    %c0_4 = arith.constant 0 : index
    %c0_5 = arith.constant 0 : index
    %4 = vector.load %arg3[%c0_4, %c0_5] : memref<1x32xf32, #tpu.memory_space<vmem>>, vector<1x32xf32>
    %5 = vector.broadcast %4 : vector<1x32xf32> to vector<16x32xf32>
    %6 = arith.addf %3, %5 : vector<16x32xf32>
    %7 = math.tanh %6 : vector<16x32xf32>
    %8 = vector.shape_cast %7 : vector<16x32xf32> to vector<2x8x32xf32>
    %c0_6 = arith.constant 0 : index
    %c0_7 = arith.constant 0 : index
    %9 = vector.load %arg4[%c0_6, %c0_7] : memref<1x32xf32, #tpu.memory_space<vmem>>, vector<1x32xf32>
    %10 = vector.shape_cast %9 : vector<1x32xf32> to vector<1x1x32xf32>
    %11 = vector.broadcast %10 : vector<1x1x32xf32> to vector<2x8x32xf32>
    %12 = arith.mulf %8, %11 : vector<2x8x32xf32>
    %cst_8 = arith.constant dense<0.000000e+00> : vector<2x8xf32>
    %13 = vector.multi_reduction <add>, %12, %cst_8 [2] : vector<2x8x32xf32> to vector<2x8xf32>
    %cst_9 = arith.constant dense<0xFF800000> : vector<2xf32>
    %14 = vector.multi_reduction <maximumf>, %13, %cst_9 [1] : vector<2x8xf32> to vector<2xf32>
    %15 = vector.shape_cast %14 : vector<2xf32> to vector<2x1xf32>
    %16 = vector.broadcast %15 : vector<2x1xf32> to vector<2x8xf32>
    %17 = arith.subf %13, %16 : vector<2x8xf32>
    %18 = math.exp %17 : vector<2x8xf32>
    %cst_10 = arith.constant dense<0.000000e+00> : vector<2xf32>
    %19 = vector.multi_reduction <add>, %18, %cst_10 [1] : vector<2x8xf32> to vector<2xf32>
    %20 = vector.shape_cast %19 : vector<2xf32> to vector<2x1xf32>
    %21 = vector.broadcast %20 : vector<2x1xf32> to vector<2x8xf32>
    %22 = arith.divf %18, %21 : vector<2x8xf32>
    %c0_11 = arith.constant 0 : index
    %c0_12 = arith.constant 0 : index
    %23 = vector.load %arg6[%c0_11, %c0_12] : memref<2x8xf32, #tpu.memory_space<vmem>>, vector<2x8xf32>
    tpu.vector_store %arg6[%c0_11, %c0_12], %22 {strides = array<i32>} : memref<2x8xf32, #tpu.memory_space<vmem>>, vector<2x8xf32>,
    %24 = vector.shape_cast %18 : vector<2x8xf32> to vector<2x8x1xf32>
    %25 = vector.broadcast %24 : vector<2x8x1xf32> to vector<2x8x32xf32>
    %26 = arith.mulf %0, %25 : vector<2x8x32xf32>
    %cst_13 = arith.constant dense<0.000000e+00> : vector<2x32xf32>
    %27 = vector.multi_reduction <add>, %26, %cst_13 [1] : vector<2x8x32xf32> to vector<2x32xf32>
    %28 = vector.broadcast %20 : vector<2x1xf32> to vector<2x32xf32>
    %29 = arith.divf %27, %28 : vector<2x32xf32>
    %c0_14 = arith.constant 0 : index
    %c0_15 = arith.constant 0 : index
    %30 = vector.load %arg5[%c0_14, %c0_15] : memref<2x32xf32, #tpu.memory_space<vmem>>, vector<2x32xf32>
    tpu.vector_store %arg5[%c0_14, %c0_15], %29 {strides = array<i32>} : memref<2x32xf32, #tpu.memory_space<vmem>>, vector<2x32xf32>,
    return
  }
  func.func @transform_0(%arg0: i32) -> (i32, i32, i32) {
    %c0_i32 = arith.constant 0 : i32
    %c0_i32_0 = arith.constant 0 : i32
    %c0_i32_1 = arith.constant 0 : i32
    return %arg0, %c0_i32, %c0_i32_0 : i32, i32, i32
  }
  func.func @transform_1(%arg0: i32) -> (i32, i32) {
    %c0_i32 = arith.constant 0 : i32
    %c0_i32_0 = arith.constant 0 : i32
    %c0_i32_1 = arith.constant 0 : i32
    return %c0_i32, %c0_i32_0 : i32, i32
  }
  func.func @transform_2(%arg0: i32) -> (i32, i32) {
    %c0_i32 = arith.constant 0 : i32
    %c0_i32_0 = arith.constant 0 : i32
    %c0_i32_1 = arith.constant 0 : i32
    return %c0_i32, %c0_i32_0 : i32, i32
  }
  func.func @transform_3(%arg0: i32) -> (i32, i32) {
    %c0_i32 = arith.constant 0 : i32
    %c0_i32_0 = arith.constant 0 : i32
    %c0_i32_1 = arith.constant 0 : i32
    return %c0_i32, %c0_i32_0 : i32, i32
  }
  func.func @transform_4(%arg0: i32) -> (i32, i32) {
    %c0_i32 = arith.constant 0 : i32
    %c0_i32_0 = arith.constant 0 : i32
    return %arg0, %c0_i32 : i32, i32
  }
  func.func @transform_5(%arg0: i32) -> (i32, i32) {
    %c0_i32 = arith.constant 0 : i32
    %c0_i32_0 = arith.constant 0 : i32
    return %arg0, %c0_i32 : i32, i32
  }
}

</mosaic_0001>

<llo_original>
// kernel: tpu_custom_call.1
$region0: #{tpu_custom_call.1}
  #allocation0 [shape = 'u32[]', space=smem, size = 0x4, offset = 0x4, fixed_abs, tag = 'smem constant byte address 0x4 - core index']
  #allocation1 [shape = 'u32[144,128]{1,0:T(1,128)}', space=vmem, size = 0x12000, scoped, tag = 'internal scratch']
  %s0 = inlined_call_operand.hbm [shape: f32[2,8,32], index: 0, kind: input, shape index: {}]
  %s1 = inlined_call_operand.hbm [shape: f32[32,32], index: 1, kind: input, shape index: {}]
  %s2 = inlined_call_operand.vmem [shape: f32[1,32], index: 2, kind: input, shape index: {}]
  %s3 = inlined_call_operand.vmem [shape: f32[1,32], index: 3, kind: input, shape index: {}]
  %s4 = inlined_call_operand.hbm [shape: f32[2,32], index: 4, kind: output, shape index: {0}]
  %s5 = inlined_call_operand.hbm [shape: f32[2,8], index: 5, kind: output, shape index: {1}]
  %6 = xla_tuple %s4, %s5
  %s7 = sld [smem:[#allocation0]]
  $region42: #{tpu_custom_call.1} parent=0
    _
  %s9 = ssub.s32 1, %s7
  %s10 = scalar_select 0, %s9, %s7
  $region1: #{tpu_custom_call.1} parent=0
    #allocation2 [shape = 'u8[8192]{0}', space=vmem, size = 0x2000, scoped, tag = 'input window, operand 0, single buffered']
    #allocation3 [shape = 's32[1]{0}', space=sflag, size = 0x4, scoped, tag = 'scoped memory for tpu_custom_call.1']
    #allocation4 [shape = 's32[1]{0}', space=sflag, size = 0x4, scoped, tag = 'scoped memory for tpu_custom_call.1']
    #allocation5 [shape = 'u8[16384]{0}', space=vmem, size = 0x4000, scoped, tag = 'input window, operand 1, single buffered']
    #allocation6 [shape = 's32[1]{0}', space=sflag, size = 0x4, scoped, tag = 'scoped memory for tpu_custom_call.1']
    #allocation7 [shape = 'u8[1024]{0}', space=vmem, size = 0x400, scoped, tag = 'output window, operand 0, single buffered']
    #allocation8 [shape = 'u8[1024]{0}', space=vmem, size = 0x400, scoped, tag = 'output window, operand 1, single buffered']
    #allocation9 [shape = 's32[1]{0}', space=sflag, size = 0x4, scoped, tag = 'scoped memory for tpu_custom_call.1']
    %11 = vsyncpa [#allocation3], 0
    %12 = vsyncpa [#allocation6], 0
    %13 = vsyncpa [#allocation4], 0
    %14 = vsyncpa [#allocation9], 0
    // Predicated region
    $region2: #{tpu_custom_call.1} parent=1 // pred_check
      _
    $region3: #{tpu_custom_call.1} parent=1 // pred_check_branch
      %16 = sbr.rel (0) target = $region5
    $region4: #{tpu_custom_call.1} parent=1 // pred_region
      %s18 = ssub.s32 256, 256
      %19 = vsyncadd [#allocation3], %s18
      %s20 = sshll.u32 [#allocation2], 4
      %s21 = int_to_ptr.vmem [resolvable:$true] %s20
      %26 = dma.hbm_to_vmem [thread:$0]  %s0, 256, %s21, [#allocation3], 128, 128, 8
    $region5: #{tpu_custom_call.1} parent=1 // pred_fallthru
      _
    // Predicated region
    $region6: #{tpu_custom_call.1} parent=1 // pred_check
      _
    $region7: #{tpu_custom_call.1} parent=1 // pred_check_branch
      %28 = sbr.rel (0) target = $region9
    $region8: #{tpu_custom_call.1} parent=1 // pred_region
      %s30 = ssub.s32 512, 512
      %31 = vsyncadd [#allocation6], %s30
      %s32 = sshll.u32 [#allocation5], 4
      %s33 = int_to_ptr.vmem [resolvable:$true] %s32
      %38 = dma.hbm_to_vmem [thread:$0]  %s1, 512, %s33, [#allocation6], 128, 128, 8
    $region9: #{tpu_custom_call.1} parent=1 // pred_fallthru
      _
    // Predicated region
    $region10: #{tpu_custom_call.1} parent=1 // pred_check
      _
    $region11: #{tpu_custom_call.1} parent=1 // pred_check_branch
      %40 = sbr.rel (0) target = $region13
    $region12: #{tpu_custom_call.1} parent=1 // pred_region
      _
    $region13: #{tpu_custom_call.1} parent=1 // pred_fallthru
      _
    // Predicated region
    $region14: #{tpu_custom_call.1} parent=1 // pred_check
      _
    $region15: #{tpu_custom_call.1} parent=1 // pred_check_branch
      %42 = sbr.rel (0) target = $region17
    $region16: #{tpu_custom_call.1} parent=1 // pred_region
      _
    $region17: #{tpu_custom_call.1} parent=1 // pred_fallthru
      _
    // Predicated region
    $region18: #{tpu_custom_call.1} parent=1 // pred_check
      _
    $region19: #{tpu_custom_call.1} parent=1 // pred_check_branch
      %44 = sbr.rel (0) target = $region21
    $region20: #{tpu_custom_call.1} parent=1 // pred_region
      %45 = dma.done [#allocation3], 256
    $region21: #{tpu_custom_call.1} parent=1 // pred_fallthru
      _
    // Predicated region
    $region22: #{tpu_custom_call.1} parent=1 // pred_check
      _
    $region23: #{tpu_custom_call.1} parent=1 // pred_check_branch
      %47 = sbr.rel (0) target = $region25
    $region24: #{tpu_custom_call.1} parent=1 // pred_region
      %48 = dma.done [#allocation6], 512
    $region25: #{tpu_custom_call.1} parent=1 // pred_fallthru
      _
    %v49 = vld [vmem:[#allocation2] sm:$0xff]
    %v50 = vld [vmem:[#allocation2 + $0x8] sm:$0xff]
    %v51 = vld [vmem:[#allocation5] sm:$0xff]
    %v52 = vld [vmem:[#allocation5 + $0x8] sm:$0xff]
    %v53 = vld [vmem:[#allocation5 + $0x10] sm:$0xff]
    %v54 = vld [vmem:[#allocation5 + $0x18] sm:$0xff]
    %v55 = vld [vmem:[%s2] sm:$0x1]
    %v57 = vlaneseq
    %v58 = vshrl.u32 %v57, 7
    %v59 = vsub.s32 0, %v58
    %v60 = vrot.slane %v55, %v59
    %vm62 = vcmask 261120
    %v64 = vsel %vm62, %v49, 0
    %v67 = vsel %vm62, %v50, 0
    %69 = vmatprep.subr.mxu0 0.0
    %70 = vmatpush1.msra.mxu0 %v51
    %71 = vmatprep.subr.mxu0 0.0
    %72 = vmatpush1.msra.mxu0 %v52
    %73 = vmatprep.subr.mxu0 0.0
    %74 = vmatpush1.msra.mxu0 %v53
    %75 = vmatprep.subr.mxu0 0.0
    %76 = vmatpush1.msra.mxu0 %v54
    %77 = vmatprep.subr.mxu0 0.0
    %78 = vmatpush1.msra.mxu0 0.0
    %79 = vmatprep.subr.mxu0 0.0
    %80 = vmatpush1.msra.mxu0 0.0
    %81 = vmatprep.subr.mxu0 0.0
    %82 = vmatpush1.msra.mxu0 0.0
    %83 = vmatprep.subr.mxu0 0.0
    %84 = vmatpush1.msra.mxu0 0.0
    %85 = vmatprep.subr.mxu0 0.0
    %86 = vmatpush1.msra.mxu0 0.0
    %87 = vmatprep.subr.mxu0 0.0
    %88 = vmatpush1.msra.mxu0 0.0
    %89 = vmatprep.subr.mxu0 0.0
    %90 = vmatpush1.msra.mxu0 0.0
    %91 = vmatprep.subr.mxu0 0.0
    %92 = vmatpush1.msra.mxu0 0.0
    %93 = vmatprep.subr.mxu0 0.0
    %94 = vmatpush1.msra.mxu0 0.0
    %95 = vmatprep.subr.mxu0 0.0
    %96 = vmatpush1.msra.mxu0 0.0
    %97 = vmatprep.subr.mxu0 0.0
    %98 = vmatpush1.msra.mxu0 0.0
    %99 = vmatprep.subr.mxu0 0.0
    %100 = vmatpush1.msra.mxu0 0.0
    %101 = vmatprep.subr.mxu0 0.0
    %102 = vmatpush1.msra.mxu0 0.0
    %103 = vmatprep.subr.mxu0 0.0
    %104 = vmatpush1.msra.mxu0 0.0
    %105 = vmatprep.subr.mxu0 0.0
    %106 = vmatpush1.msra.mxu0 0.0
    %107 = vmatprep.subr.mxu0 0.0
    %108 = vmatpush1.msra.mxu0 0.0
    %109 = vmatprep.subr.mxu0 0.0
    %110 = vmatpush1.msra.mxu0 0.0
    %111 = vmatprep.subr.mxu0 0.0
    %112 = vmatpush1.msra.mxu0 0.0
    %113 = vmatprep.subr.mxu0 0.0
    %114 = vmatpush1.msra.mxu0 0.0
    %115 = vmatprep.subr.mxu0 0.0
    %116 = vmatpush1.msra.mxu0 0.0
    %117 = vmatprep.subr.mxu0 0.0
    %118 = vmatpush1.msra.mxu0 0.0
    %119 = vmatprep.subr.mxu0 0.0
    %120 = vmatpush1.msra.mxu0 0.0
    %121 = vmatprep.subr.mxu0 0.0
    %122 = vmatpush1.msra.mxu0 0.0
    %123 = vmatprep.subr.mxu0 0.0
    %124 = vmatpush1.msra.mxu0 0.0
    %125 = vmatprep.subr.mxu0 0.0
    %126 = vmatpush1.msra.mxu0 0.0
    %127 = vmatprep.subr.mxu0 0.0
    %128 = vmatpush1.msra.mxu0 0.0
    %129 = vmatprep.subr.mxu0 0.0
    %130 = vmatpush1.msra.mxu0 0.0
    %131 = vmatprep.subr.mxu0 0.0
    %132 = vmatpush1.msra.mxu0 0.0
    %133 = vmatprep.mubr.f32.mxu0 0.0
    %134 = vmatmul.mubr.f32.gmra.mrb[0].mxu0 %v64
    %v135 = vpop.f32.mrb[0].mxu0
    %v136 = vadd.f32 %v60, %v135
    %v137 = vpop.f32.mrb[0].mxu0
    %138 = vmatprep.mubr.f32.mxu0 0.0
    %139 = vmatmul.mubr.f32.gmra.mrb[0].mxu0 %v67
    %v140 = vpop.f32.mrb[0].mxu0
    %v141 = vadd.f32 %v60, %v140
    %v142 = vpop.f32.mrb[0].mxu0
    %143 = vdwg.mxu0
    %v144 = vtanh.pop %v136
    %v145 = vtanh.pop %v141
    %v146 = vld [vmem:[%s3] sm:$0x1]
    %v148 = vlaneseq
    %v149 = vshrl.u32 %v148, 7
    %v150 = vsub.s32 0, %v149
    %v151 = vrot.slane %v146, %v150
    %v153 = vmul.f32 %v144, %v151
    %v154 = vmul.f32 %v145, %v151
    %v155 = vsel %vm62, %v153, 0.0
    %156 = vadd.xlane.f32.xlu0 %v155
    %v157 = vpop.xlane.xlu0 %156
    %v158 = vsel %vm62, %v154, 0.0
    %159 = vadd.xlane.f32.xlu0 %v158
    %v160 = vpop.xlane.xlu0 %159
    %v163 = vlaneseq
    %v164 = vand.u32 %v163, 127
    %v165 = vlaneseq
    %v166 = vshrl.u32 %v165, 7
    %v167 = vsub.s32 %v164, %v166
    %v168 = vrot.slane %v157, %v167
    %v169 = vlaneseq
    %v170 = vshrl.u32 %v169, 7
    %v171 = vsub.s32 %v164, %v170
    %v172 = vrot.slane %v160, %v171
    %vm173 = vcmask 1041409
    %v174 = vsel %vm173, %v172, %v168
    %vm176 = vcmask 58368
    %v177 = vsel %vm176, %v174, -inf
    %178 = vmax.xlane.f32.xlu0 %v177
    %v179 = vpop.xlane.xlu0 %178
    %v181 = vlaneseq
    %v182 = vshrl.u32 %v181, 7
    %v183 = vsub.s32 0, %v182
    %v184 = vrot.slane %v179, %v183
    %v185 = vlaneseq
    %v186 = vshrl.u32 %v185, 7
    %v187 = vsub.s32 1, %v186
    %v188 = vrot.slane %v179, %v187
    %v191 = vsub.f32 %v157, %v184
    %v192 = vsub.f32 %v160, %v188
    %v193 = vmul.f32 %v191, 1.442695
    %v194 = vpow.pop %v193
    %v195 = vmul.f32 %v192, 1.442695
    %v196 = vpow.pop %v195
    %199 = vset.pattern.permute.xlu0 0
    %200 = vperm.xlu0 %199, %v194
    %v201 = vpop.permute.xlu0 %200
    %202 = vset.pattern.permute.xlu0 0
    %203 = vperm.xlu0 %202, %v196
    %v204 = vpop.permute.xlu0 %203
    %v205 = vlaneseq
    %v206 = vshrl.u32 %v205, 7
    %v207 = vsub.s32 %v164, %v206
    %v208 = vrot.slane %v201, %v207
    %v209 = vlaneseq
    %v210 = vshrl.u32 %v209, 7
    %v211 = vsub.s32 %v164, %v210
    %v212 = vrot.slane %v204, %v211
    %v213 = vsel %vm173, %v212, %v208
    %v215 = vsel %vm176, %v213, 0.0
    %216 = vadd.xlane.f32.xlu0 %v215
    %v217 = vpop.xlane.xlu0 %216
    %v219 = vlaneseq
    %v220 = vshrl.u32 %v219, 7
    %v221 = vsub.s32 0, %v220
    %v222 = vrot.slane %v217, %v221
    %v223 = vlaneseq
    %v224 = vshrl.u32 %v223, 7
    %v225 = vsub.s32 1, %v224
    %v226 = vrot.slane %v217, %v225
    %v229 = vrcp.pop %v222
    %v230 = vmul.f32 %v194, %v229
    %v231 = vrcp.pop %v226
    %v232 = vmul.f32 %v196, %v231
    %235 = vset.pattern.permute.xlu0 0
    %236 = vperm.xlu0 %235, %v230
    %v237 = vpop.permute.xlu0 %236
    %238 = vset.pattern.permute.xlu0 0
    %239 = vperm.xlu0 %238, %v232
    %v240 = vpop.permute.xlu0 %239
    %v241 = vlaneseq
    %v242 = vshrl.u32 %v241, 7
    %v243 = vsub.s32 %v164, %v242
    %v244 = vrot.slane %v237, %v243
    %v245 = vlaneseq
    %v246 = vshrl.u32 %v245, 7
    %v247 = vsub.s32 %v164, %v246
    %v248 = vrot.slane %v240, %v247
    %v249 = vsel %vm173, %v248, %v244
    %251 = vst.msk [vmem:[#allocation8] sm:$0x3] %vm176, %v249
    %v254 = vmul.f32 %v49, %v201
    %v255 = vmul.f32 %v50, %v204
    %v256 = vsel %vm62, %v254, 0.0
    %v257 = vrot.slane %v256, 4
    %v258 = vadd.f32 %v256, %v257
    %v259 = vrot.slane %v258, 2
    %v260 = vadd.f32 %v258, %v259
    %v261 = vrot.slane %v260, 1
    %v262 = vadd.f32 %v260, %v261
    %v263 = vsel %vm62, %v255, 0.0
    %v264 = vrot.slane %v263, 4
    %v265 = vadd.f32 %v263, %v264
    %v266 = vrot.slane %v265, 2
    %v267 = vadd.f32 %v265, %v266
    %v268 = vrot.slane %v267, 1
    %v269 = vadd.f32 %v267, %v268
    %v270 = vrot.slane %v217, 1
    %v273 = vrcp.pop %v217
    %v274 = vmul.f32 %v262, %v273
    %v275 = vrcp.pop %v270
    %v276 = vmul.f32 %v269, %v275
    %v279 = vrot.slane %v276, 7
    %v280 = vsel %vm173, %v279, %v274
    %vm282 = vcmask 254976
    %283 = vst.msk [vmem:[#allocation7] sm:$0x3] %vm282, %v280
    // Predicated region
    $region26: #{tpu_custom_call.1} parent=1 // pred_check
      _
    $region27: #{tpu_custom_call.1} parent=1 // pred_check_branch
      %285 = sbr.rel (0) target = $region29
    $region28: #{tpu_custom_call.1} parent=1 // pred_region
      %s287 = ssub.s32 32, 32
      %288 = vsyncadd [#allocation4], %s287
      %s290 = sshll.u32 [#allocation7], 4
      %s291 = int_to_ptr.vmem [resolvable:$true] %s290
      %293 = dma.vmem_to_hbm [thread:$0]  %s291, 32, %s4, [#allocation4]
    $region29: #{tpu_custom_call.1} parent=1 // pred_fallthru
      _
    // Predicated region
    $region30: #{tpu_custom_call.1} parent=1 // pred_check
      _
    $region31: #{tpu_custom_call.1} parent=1 // pred_check_branch
      %295 = sbr.rel (0) target = $region33
    $region32: #{tpu_custom_call.1} parent=1 // pred_region
      %s297 = ssub.s32 32, 32
      %298 = vsyncadd [#allocation9], %s297
      %s300 = sshll.u32 [#allocation8], 4
      %s301 = int_to_ptr.vmem [resolvable:$true] %s300
      %303 = dma.vmem_to_hbm [thread:$0]  %s301, 32, %s5, [#allocation9]
    $region33: #{tpu_custom_call.1} parent=1 // pred_fallthru
      _
    // Predicated region
    $region34: #{tpu_custom_call.1} parent=1 // pred_check
      _
    $region35: #{tpu_custom_call.1} parent=1 // pred_check_branch
      %305 = sbr.rel (0) target = $region37
    $region36: #{tpu_custom_call.1} parent=1 // pred_region
      %306 = dma.done [#allocation4], 32
    $region37: #{tpu_custom_call.1} parent=1 // pred_fallthru
      _
    // Predicated region
    $region38: #{tpu_custom_call.1} parent=1 // pred_check
      _
    $region39: #{tpu_custom_call.1} parent=1 // pred_check_branch
      %308 = sbr.rel (0) target = $region41
    $region40: #{tpu_custom_call.1} parent=1 // pred_region
      %309 = dma.done [#allocation9], 32
    $region41: #{tpu_custom_call.1} parent=1 // pred_fallthru
      _
    %310 = vsyncpa [#allocation3], 1
    %311 = vsyncpa [#allocation6], 1
    %312 = vsyncpa [#allocation4], 1
    %313 = vsyncpa [#allocation9], 1

</llo_original>
